<compile_context>
chip_gen: v5e
topology: v5e:2x2
jax: 0.10.0
libtpu: 0.0.40
codegen_flags: <defaults>
</compile_context>

<pallas_src>
import math

import jax
import jax.numpy as jnp
from jax.experimental import pallas as pl
from jax.experimental.pallas import tpu as pltpu

NUM_LAYER = 4
LR_MUL = 0.01
NEG_SLOPE = 0.2
FUSED_SCALE = math.sqrt(2.0)


def prepare_params(weights, biases, weight_dtype=jnp.bfloat16):
    """One-time parameter prep (NOT per forward call).

    weights: (L, D_out, D_in) PyTorch F.linear layout, f32
    biases:  (L, D_out) f32
    Returns:
      w_t: (L, D_in, D_out) with the EqualLinear scale folded in, cast to weight_dtype
      b:   (L, 1, D_out) f32 with lr_mul folded in
    """
    L, d_out, d_in = weights.shape
    eq_scale = (1.0 / math.sqrt(d_in)) * LR_MUL
    w_t = jnp.transpose(weights * eq_scale, (0, 2, 1)).astype(weight_dtype)
    b = (biases * LR_MUL).reshape(L, 1, d_out).astype(jnp.float32)
    return w_t, b


def mapper_kernel(x_ref, w_ref, b_ref, o_ref, xs_ref):
    i = pl.program_id(0)

    # PixelNorm once; normalized activations stay resident in VMEM scratch.
    @pl.when(i == 0)
    def _():
        x = x_ref[...].astype(jnp.float32)                    # (B, D)
        mean_sq = jnp.mean(x * x, axis=1, keepdims=True)      # (B, 1)
        xs_ref[...] = x * jax.lax.rsqrt(mean_sq + 1e-8)

    # One EqualLinear + fused leaky-relu per grid step; this layer's weight tile
    # was prefetched by the BlockSpec pipeline while the previous layer computed.
    x = xs_ref[...]                                           # (B, D) f32
    w = w_ref[0]                                              # (D, D) bf16, scale folded in
    b = b_ref[0]                                              # (1, D) f32, lr_mul folded in
    h = jnp.dot(x.astype(w.dtype), w,
                preferred_element_type=jnp.float32)           # f32 accumulate on MXU
    h = h + b
    xs_ref[...] = jnp.where(h >= 0.0, h, NEG_SLOPE * h) * FUSED_SCALE

    @pl.when(i == NUM_LAYER - 1)
    def _():
        o_ref[...] = xs_ref[...].astype(o_ref.dtype)


def mapper_forward(x, w_t, b):
    """x: (B, D) f32; w_t: (L, D, D) prepped weights; b: (L, 1, D) prepped biases."""
    B, D = x.shape
    L = w_t.shape[0]
    assert L == NUM_LAYER

    wbytes = jnp.dtype(w_t.dtype).itemsize
    cost = pl.CostEstimate(
        flops=2 * L * B * D * D,
        transcendentals=B,                                    # PixelNorm rsqrt
        bytes_accessed=L * D * D * wbytes + L * D * 4 + 2 * B * D * 4,
    )
    # Double-buffered per-layer weight tile + x/out/bias blocks + resident scratch.
    vmem_need = 2 * (D * D * wbytes + 2 * B * D * 4 + D * 4) + B * D * 4
    vmem_limit = int(max(4 * vmem_need, 8 * 1024 * 1024))

    return pl.pallas_call(
        mapper_kernel,
        out_shape=jax.ShapeDtypeStruct((B, D), jnp.float32),
        grid_spec=pltpu.PrefetchScalarGridSpec(
            num_scalar_prefetch=0,
            grid=(L,),
            in_specs=[
                pl.BlockSpec((B, D), lambda i: (0, 0)),        # x (used at i == 0)
                pl.BlockSpec((1, D, D), lambda i: (i, 0, 0)),  # per-layer weights (bf16)
                pl.BlockSpec((1, 1, D), lambda i: (i, 0, 0)),  # per-layer bias
            ],
            out_specs=pl.BlockSpec((B, D), lambda i: (0, 0)),
            scratch_shapes=[pltpu.VMEM((B, D), jnp.float32)],  # resident activations
        ),
        compiler_params=pltpu.CompilerParams(
            dimension_semantics=("arbitrary",),                # serial layer chain
            vmem_limit_bytes=vmem_limit,
        ),
        cost_estimate=cost,
    )(x, w_t, b)


def reference_forward(x, weights, biases, weight_dtype=jnp.float32):
    """Pure-JAX reference mirroring the PyTorch module.

    With weight_dtype=bf16 it also mirrors the kernel's weight/activation rounding,
    giving a tight check of the kernel logic independent of bf16 drift.
    """
    x = x * jax.lax.rsqrt(jnp.mean(x * x, axis=1, keepdims=True) + 1e-8)
    D = x.shape[1]
    eq_scale = (1.0 / math.sqrt(D)) * LR_MUL
    for i in range(NUM_LAYER):
        w = (weights[i] * eq_scale).astype(weight_dtype).astype(jnp.float32)
        xq = x.astype(weight_dtype).astype(jnp.float32)
        h = xq @ w.T + biases[i] * LR_MUL
        x = jnp.where(h >= 0.0, h, NEG_SLOPE * h) * FUSED_SCALE
    return x


if __name__ == "__main__":
    B = 8            # batch of latent codes
    D = 512          # latent_dim (module default)

    key = jax.random.PRNGKey(0)
    kx, kw = jax.random.split(key)

    x = jax.random.normal(kx, (B, D), dtype=jnp.float32)
    # EqualLinear init: weight = randn(out, in) / lr_mul ; bias = zeros (bias_init=0)
    weights = jax.random.normal(kw, (NUM_LAYER, D, D), dtype=jnp.float32) / LR_MUL
    biases = jnp.zeros((NUM_LAYER, D), dtype=jnp.float32)

    # One-time parameter prep (scale folding, transpose, bf16 cast) — not per call.
    w_t, b = prepare_params(weights, biases)

    out = mapper_forward(x, w_t, b)
    out = jax.block_until_ready(out)
    assert out.shape == (B, D)

    # Tight check of kernel logic: reference with the same bf16 weight/activation rounding.
    ref_q = reference_forward(x, weights, biases, weight_dtype=jnp.bfloat16)
    assert jnp.allclose(out, ref_q, atol=2e-3, rtol=2e-3), "mismatch vs bf16-quantized reference"

    # End-to-end check vs the pure-f32 PyTorch-equivalent reference
    # (tolerance loosened only for the bf16 weight streaming).
    ref = reference_forward(x, weights, biases)
    assert jnp.allclose(out, ref, atol=5e-2, rtol=5e-2), "mismatch vs f32 reference"

    print("KERNEL_OK")
</pallas_src>

<mosaic_0001>
module attributes {stable_mosaic.version = 11 : i64} {
  func.func @mapper_kernel(%arg0: i32, %arg1: memref<8x512xf32, #tpu.memory_space<vmem>>, %arg2: memref<1x512x512xbf16, #tpu.memory_space<vmem>>, %arg3: memref<1x1x512xf32, #tpu.memory_space<vmem>>, %arg4: memref<8x512xf32, #tpu.memory_space<vmem>>, %arg5: memref<8x512xf32, #tpu.memory_space<vmem>>) attributes {dimension_semantics = [#tpu.dimension_semantics<arbitrary>], iteration_bounds = array<i64: 4>, scalar_prefetch = 0 : i64, scratch_operands = 1 : i64, tpu.core_type = #tpu.core_type<tc>, window_params = [{pipeline_mode = #tpu.pipeline_mode<synchronous>, transform_indices = @transform_0, window_bounds = array<i64: 8, 512>}, {transform_indices = @transform_1, window_bounds = array<i64: 1, 512, 512>}, {transform_indices = @transform_2, window_bounds = array<i64: 1, 1, 512>}, {pipeline_mode = #tpu.pipeline_mode<synchronous>, transform_indices = @transform_3, window_bounds = array<i64: 8, 512>}]} {
    %c0_i32 = arith.constant 0 : i32
    %0 = arith.cmpi eq, %arg0, %c0_i32 : i32
    %1 = arith.extui %0 : i1 to i32
    %c0_i32_0 = arith.constant 0 : i32
    %2 = arith.cmpi ne, %1, %c0_i32_0 : i32
    scf.if %2 {
      %c0_14 = arith.constant 0 : index
      %c0_15 = arith.constant 0 : index
      %23 = vector.load %arg1[%c0_14, %c0_15] : memref<8x512xf32, #tpu.memory_space<vmem>>, vector<8x512xf32>
      %24 = arith.mulf %23, %23 : vector<8x512xf32>
      %cst_16 = arith.constant dense<0.000000e+00> : vector<8xf32>
      %25 = vector.multi_reduction <add>, %24, %cst_16 [1] : vector<8x512xf32> to vector<8xf32>
      %26 = vector.shape_cast %25 : vector<8xf32> to vector<8x1xf32>
      %cst_17 = arith.constant 5.120000e+02 : f32
      %27 = vector.broadcast %cst_17 : f32 to vector<8x1xf32>
      %28 = arith.divf %26, %27 : vector<8x1xf32>
      %cst_18 = arith.constant 9.99999993E-9 : f32
      %29 = vector.broadcast %cst_18 : f32 to vector<8x1xf32>
      %30 = arith.addf %28, %29 : vector<8x1xf32>
      %31 = math.rsqrt %30 : vector<8x1xf32>
      %32 = vector.broadcast %31 : vector<8x1xf32> to vector<8x512xf32>
      %33 = arith.mulf %23, %32 : vector<8x512xf32>
      %c0_19 = arith.constant 0 : index
      %c0_20 = arith.constant 0 : index
      %34 = vector.load %arg5[%c0_19, %c0_20] : memref<8x512xf32, #tpu.memory_space<vmem>>, vector<8x512xf32>
      tpu.vector_store %arg5[%c0_19, %c0_20], %33 {strides = array<i32>} : memref<8x512xf32, #tpu.memory_space<vmem>>, vector<8x512xf32>,
    } else {
    }
    %c0 = arith.constant 0 : index
    %c0_1 = arith.constant 0 : index
    %3 = vector.load %arg5[%c0, %c0_1] : memref<8x512xf32, #tpu.memory_space<vmem>>, vector<8x512xf32>
    %c0_2 = arith.constant 0 : index
    %c0_3 = arith.constant 0 : index
    %c0_4 = arith.constant 0 : index
    %4 = vector.load %arg2[%c0_2, %c0_3, %c0_4] : memref<1x512x512xbf16, #tpu.memory_space<vmem>>, vector<1x512x512xbf16>
    %5 = vector.shape_cast %4 : vector<1x512x512xbf16> to vector<512x512xbf16>
    %c0_5 = arith.constant 0 : index
    %c0_6 = arith.constant 0 : index
    %c0_7 = arith.constant 0 : index
    %6 = vector.load %arg3[%c0_5, %c0_6, %c0_7] : memref<1x1x512xf32, #tpu.memory_space<vmem>>, vector<1x1x512xf32>
    %7 = vector.shape_cast %6 : vector<1x1x512xf32> to vector<1x512xf32>
    %8 = arith.truncf %3 : vector<8x512xf32> to vector<8x512xbf16>
    %cst = arith.constant dense<0.000000e+00> : vector<8x512xf32>
    %9 = tpu.matmul %8, %5, %cst {dimension_numbers = #tpu.dot_dimension_numbers<[1], [0], [0], [1], [0, 0, 1, 1], [], []>} : vector<8x512xbf16>, vector<512x512xbf16>, vector<8x512xf32> -> vector<8x512xf32>
    %10 = vector.broadcast %7 : vector<1x512xf32> to vector<8x512xf32>
    %11 = arith.addf %9, %10 : vector<8x512xf32>
    %cst_8 = arith.constant 0.000000e+00 : f32
    %12 = vector.broadcast %cst_8 : f32 to vector<8x512xf32>
    %13 = arith.cmpf oge, %11, %12 : vector<8x512xf32>
    %cst_9 = arith.constant 2.000000e-01 : f32
    %14 = vector.broadcast %cst_9 : f32 to vector<8x512xf32>
    %15 = arith.mulf %14, %11 : vector<8x512xf32>
    %16 = arith.select %13, %11, %15 : vector<8x512xi1>, vector<8x512xf32>
    %cst_10 = arith.constant 1.41421354 : f32
    %17 = vector.broadcast %cst_10 : f32 to vector<8x512xf32>
    %18 = arith.mulf %16, %17 : vector<8x512xf32>
    %c0_11 = arith.constant 0 : index
    %c0_12 = arith.constant 0 : index
    %19 = vector.load %arg5[%c0_11, %c0_12] : memref<8x512xf32, #tpu.memory_space<vmem>>, vector<8x512xf32>
    tpu.vector_store %arg5[%c0_11, %c0_12], %18 {strides = array<i32>} : memref<8x512xf32, #tpu.memory_space<vmem>>, vector<8x512xf32>,
    %c3_i32 = arith.constant 3 : i32
    %20 = arith.cmpi eq, %arg0, %c3_i32 : i32
    %21 = arith.extui %20 : i1 to i32
    %c0_i32_13 = arith.constant 0 : i32
    %22 = arith.cmpi ne, %21, %c0_i32_13 : i32
    scf.if %22 {
      %c0_14 = arith.constant 0 : index
      %c0_15 = arith.constant 0 : index
      %23 = vector.load %arg5[%c0_14, %c0_15] : memref<8x512xf32, #tpu.memory_space<vmem>>, vector<8x512xf32>
      %c0_16 = arith.constant 0 : index
      %c0_17 = arith.constant 0 : index
      %24 = vector.load %arg4[%c0_16, %c0_17] : memref<8x512xf32, #tpu.memory_space<vmem>>, vector<8x512xf32>
      tpu.vector_store %arg4[%c0_16, %c0_17], %23 {strides = array<i32>} : memref<8x512xf32, #tpu.memory_space<vmem>>, vector<8x512xf32>,
    } else {
    }
    return
  }
  func.func @transform_0(%arg0: i32) -> (i32, i32) {
    %c0_i32 = arith.constant 0 : i32
    %c0_i32_0 = arith.constant 0 : i32
    %c0_i32_1 = arith.constant 0 : i32
    return %c0_i32, %c0_i32_0 : i32, i32
  }
  func.func @transform_1(%arg0: i32) -> (i32, i32, i32) {
    %c0_i32 = arith.constant 0 : i32
    %c0_i32_0 = arith.constant 0 : i32
    %c0_i32_1 = arith.constant 0 : i32
    return %arg0, %c0_i32, %c0_i32_0 : i32, i32, i32
  }
  func.func @transform_2(%arg0: i32) -> (i32, i32, i32) {
    %c0_i32 = arith.constant 0 : i32
    %c0_i32_0 = arith.constant 0 : i32
    %c0_i32_1 = arith.constant 0 : i32
    return %arg0, %c0_i32, %c0_i32_0 : i32, i32, i32
  }
  func.func @transform_3(%arg0: i32) -> (i32, i32) {
    %c0_i32 = arith.constant 0 : i32
    %c0_i32_0 = arith.constant 0 : i32
    %c0_i32_1 = arith.constant 0 : i32
    return %c0_i32, %c0_i32_0 : i32, i32
  }
}

</mosaic_0001>

<llo_original>
// kernel: tpu_custom_call.1
$region0: #{tpu_custom_call.1}
  #allocation0 [shape = 'u32[]', space=smem, size = 0x4, offset = 0x4, fixed_abs, tag = 'smem constant byte address 0x4 - core index']
  #allocation1 [shape = 'u32[72,128]{1,0:T(1,128)}', space=vmem, size = 0x9000, scoped, tag = 'internal scratch']
  #allocation2 [shape = 'f32[8,512]{1,0:T(8,128)}', space=vmem, size = 0x4000, scoped, tag = 'scratch operand']
  %s0 = inlined_call_operand.hbm [shape: f32[8,512], index: 0, kind: input, shape index: {}]
  %s1 = inlined_call_operand.hbm [shape: bf16[4,512,512], index: 1, kind: input, shape index: {}]
  %s2 = inlined_call_operand.hbm [shape: f32[4,1,512], index: 2, kind: input, shape index: {}]
  %s3 = inlined_call_operand.hbm [shape: f32[8,512], index: 3, kind: output, shape index: {}]
  %s4 = sld [smem:[#allocation0]]
  $region65: #{tpu_custom_call.1} parent=0
    _
  %s6 = ssub.s32 1, %s4
  %s7 = scalar_select 0, %s6, %s4
  $region1: #{tpu_custom_call.1} parent=0
    #allocation3 [shape = 'u8[16384]{0}', space=vmem, size = 0x4000, scoped, tag = 'input window, operand 0, single buffered']
    #allocation4 [shape = 's32[2]{0}', space=sflag, size = 0x8, scoped, tag = 'scoped memory for tpu_custom_call.1']
    #allocation5 [shape = 's32[2]{0}', space=sflag, size = 0x8, scoped, tag = 'scoped memory for tpu_custom_call.1']
    #allocation6 [shape = 'u8[1048576]{0}', space=vmem, size = 0x100000, scoped, tag = 'input window, operand 1']
    #allocation7 [shape = 's32[2]{0}', space=sflag, size = 0x8, scoped, tag = 'scoped memory for tpu_custom_call.1']
    #allocation8 [shape = 'u8[4096]{0}', space=vmem, size = 0x1000, scoped, tag = 'input window, operand 2']
    #allocation9 [shape = 'u8[16384]{0}', space=vmem, size = 0x4000, scoped, tag = 'output window, operand 0, single buffered']
    %8 = vsyncpa [#allocation4], 0
    %9 = vsyncpa [#allocation7], 0
    %s10 = scalar_lea.sflag [#allocation7], 1
    %11 = vsyncpa %s10, 0
    %12 = vsyncpa [#allocation5], 0
    loop: start=0, step=1, limit=6
    $region2: #{tpu_custom_call.1} parent=1 // loop_pre_header
      _
    $region3: #{tpu_custom_call.1} parent=1 // loop_header
      %s14 = sphi 0, %s18
      %p15 = scmp.ge.s32.totalorder %s14, 6
      %s22 = sphi 0, %s22
      %s24 = sphi 0, %s22
      %s25 = sphi 0, %s24
      %s39 = sphi 0, %s25
      %s45 = sphi 0, %s47
      %s48 = sphi 0, %s45
      %s49 = sphi 0, %s48
      %s65 = sphi 0, %s49
      %s71 = sphi 0, %s73
      %s74 = sphi 0, %s71
      %s75 = sphi 0, %s74
      %s91 = sphi 0, %s75
      %s95 = sphi 0, %s95
      %s97 = sphi 0, %s95
      %s98 = sphi 0, %s97
      %s112 = sphi 0, %s98
    $region4: #{tpu_custom_call.1} parent=1 // loop_header_branch
      %17 = sbr.rel (%p15) target = $region8
    $region5: #{tpu_custom_call.1} parent=1 // loop_body
      %s19 = ssub.s32 %s14, 1
      %s20 = ssub.s32 %s14, 2
      %s21 = sadd.s32 %s14, 1
      %s23 = sadd.s32 %s22, 1
      %p26 = scmp.eq.s32.totalorder %s14, 3
      %p27 = scmp.ne.s32.totalorder %s22, %s24
      %p28 = scmp.eq.s32.totalorder %s14, 0
      %p29 = por %p27, %p28
      %p30 = scmp.ne.s32.totalorder %s22, %s24
      %p31 = scmp.eq.s32.totalorder %s19, 3
      %p32 = por %p30, %p31
      %p33 = scmp.ne.s32.totalorder %s24, %s25
      %p34 = scmp.eq.s32.totalorder %s19, 0
      %p35 = por %p33, %p34
      %p36 = scmp.ne.s32.totalorder %s24, %s25
      %p37 = scmp.eq.s32.totalorder %s20, 3
      %p38 = por %p36, %p37
      %p40 = scmp.ne.s32.totalorder %s25, %s39
      %p41 = scmp.eq.s32.totalorder %s20, 0
      %p42 = por %p40, %p41
      %s43 = ssub.s32 %s14, %s21
      %p44 = scmp.eq.s32.totalorder %s43, 0
      %s46 = sadd.s32 %s45, 1
      %s47 = scalar_select %p44, %s45, %s46
      %p50 = pneg %p44
      %p51 = scmp.eq.s32.totalorder %s14, 3
      %p52 = por %p50, %p51
      %p53 = scmp.ne.s32.totalorder %s45, %s48
      %p54 = scmp.eq.s32.totalorder %s14, 0
      %p55 = por %p53, %p54
      %p56 = scmp.ne.s32.totalorder %s45, %s48
      %p57 = scmp.eq.s32.totalorder %s19, 3
      %p58 = por %p56, %p57
      %p59 = scmp.ne.s32.totalorder %s48, %s49
      %p60 = scmp.eq.s32.totalorder %s19, 0
      %p61 = por %p59, %p60
      %p62 = scmp.ne.s32.totalorder %s48, %s49
      %p63 = scmp.eq.s32.totalorder %s20, 3
      %p64 = por %p62, %p63
      %p66 = scmp.ne.s32.totalorder %s49, %s65
      %p67 = scmp.eq.s32.totalorder %s20, 0
      %p68 = por %p66, %p67
      %s69 = ssub.s32 %s14, %s21
      %p70 = scmp.eq.s32.totalorder %s69, 0
      %s72 = sadd.s32 %s71, 1
      %s73 = scalar_select %p70, %s71, %s72
      %p76 = pneg %p70
      %p77 = scmp.eq.s32.totalorder %s14, 3
      %p78 = por %p76, %p77
      %p79 = scmp.ne.s32.totalorder %s71, %s74
      %p80 = scmp.eq.s32.totalorder %s14, 0
      %p81 = por %p79, %p80
      %p82 = scmp.ne.s32.totalorder %s71, %s74
      %p83 = scmp.eq.s32.totalorder %s19, 3
      %p84 = por %p82, %p83
      %p85 = scmp.ne.s32.totalorder %s74, %s75
      %p86 = scmp.eq.s32.totalorder %s19, 0
      %p87 = por %p85, %p86
      %p88 = scmp.ne.s32.totalorder %s74, %s75
      %p89 = scmp.eq.s32.totalorder %s20, 3
      %p90 = por %p88, %p89
      %p92 = scmp.ne.s32.totalorder %s75, %s91
      %p93 = scmp.eq.s32.totalorder %s20, 0
      %p94 = por %p92, %p93
      %s96 = sadd.s32 %s95, 1
      %p99 = scmp.eq.s32.totalorder %s14, 3
      %p100 = scmp.ne.s32.totalorder %s95, %s97
      %p101 = scmp.eq.s32.totalorder %s14, 0
      %p102 = por %p100, %p101
      %p103 = scmp.ne.s32.totalorder %s95, %s97
      %p104 = scmp.eq.s32.totalorder %s19, 3
      %p105 = por %p103, %p104
      %p106 = scmp.ne.s32.totalorder %s97, %s98
      %p107 = scmp.eq.s32.totalorder %s19, 0
      %p108 = por %p106, %p107
      %p109 = scmp.ne.s32.totalorder %s97, %s98
      %p110 = scmp.eq.s32.totalorder %s20, 3
      %p111 = por %p109, %p110
      %p113 = scmp.ne.s32.totalorder %s98, %s112
      %p114 = scmp.eq.s32.totalorder %s20, 0
      %p115 = por %p113, %p114
      %p116 = scmp.le.s32.totalorder 1, %s14
      %p117 = scmp.lt.s32.totalorder %s14, 5
      %p118 = pnand %p116, %p117
      %p119 = pneg %p118
      // Predicated region
      $region9: #{tpu_custom_call.1} parent=5 // pred_check
        _
      $region10: #{tpu_custom_call.1} parent=5 // pred_check_branch
        %121 = sbr.rel (%p118) target = $region12
      $region11: #{tpu_custom_call.1} parent=5 // pred_region
        %s122 = ssub.s32 %s14, 1
        // Predicated region
        $region13: #{tpu_custom_call.1} parent=11 // pred_check
          %p123 = pneg %p35
        $region14: #{tpu_custom_call.1} parent=11 // pred_check_branch
          %125 = sbr.rel (%p123) target = $region16
        $region15: #{tpu_custom_call.1} parent=11 // pred_region
          %127 = vsyncadd [#allocation4], 0
          %s129 = sshll.u32 %s0, 4
          %s130 = int_to_ptr.hbm [resolvable:$true] %s129
          %s131 = sshll.u32 [#allocation3], 4
          %s132 = int_to_ptr.vmem [resolvable:$true] %s131
          %134 = dma.hbm_to_vmem [thread:$0]  %s130, 512, %s132, [#allocation4]
        $region16: #{tpu_custom_call.1} parent=11 // pred_fallthru
          _
      $region12: #{tpu_custom_call.1} parent=5 // pred_fallthru
        _
      %p135 = scmp.lt.s32.totalorder %s14, 4
      // Predicated region
      $region17: #{tpu_custom_call.1} parent=5 // pred_check
        %p136 = pneg %p135
      $region18: #{tpu_custom_call.1} parent=5 // pred_check_branch
        %138 = sbr.rel (%p136) target = $region20
      $region19: #{tpu_custom_call.1} parent=5 // pred_region
        // Predicated region
        $region21: #{tpu_custom_call.1} parent=19 // pred_check
          %p139 = pneg %p55
        $region22: #{tpu_custom_call.1} parent=19 // pred_check_branch
          %141 = sbr.rel (%p139) target = $region24
        $region23: #{tpu_custom_call.1} parent=19 // pred_region
          %s142 = sand.u32 %s14, 1
          %s143 = scalar_lea.sflag [#allocation7], %s142
          %s144 = sand.u32 %s45, 1
          %s145 = smul.addr %s144, 1024
          %s146 = scalar_lea.vmem [#allocation6], %s145
          %148 = vsyncadd %s143, 0
          %s149 = smul.addr %s14, 256
          %s150 = smul.addr %s149, 4
          %s151 = scalar_lea.hbm %s1, %s150
          %s152 = sshll.u32 %s151, 4
          %s153 = int_to_ptr.hbm [resolvable:$true] %s152
          %s154 = sshll.u32 %s146, 4
          %s155 = int_to_ptr.vmem [resolvable:$true] %s154
          %160 = dma.hbm_to_vmem [thread:$0]  %s153, 16384, %s155, %s143, 256, 256, 16
        $region24: #{tpu_custom_call.1} parent=19 // pred_fallthru
          _
        // Predicated region
        $region25: #{tpu_custom_call.1} parent=19 // pred_check
          %p161 = pneg %p81
        $region26: #{tpu_custom_call.1} parent=19 // pred_check_branch
          %163 = sbr.rel (%p161) target = $region28
        $region27: #{tpu_custom_call.1} parent=19 // pred_region
          %s164 = sand.u32 %s14, 1
          %s165 = scalar_lea.sflag [#allocation7], %s164
          %s166 = sand.u32 %s71, 1
          %s167 = smul.addr %s166, 4
          %s168 = scalar_lea.vmem [#allocation8], %s167
          %170 = vsyncadd %s165, 0
          %s171 = smul.addr %s14, 4
          %s172 = scalar_lea.hbm %s2, %s171
          %s174 = sshll.u32 %s172, 4
          %s175 = int_to_ptr.hbm [resolvable:$true] %s174
          %s176 = sshll.u32 %s168, 4
          %s177 = int_to_ptr.vmem [resolvable:$true] %s176
          %179 = dma.hbm_to_vmem [thread:$0]  %s175, 64, %s177, %s165
        $region28: #{tpu_custom_call.1} parent=19 // pred_fallthru
          _
      $region20: #{tpu_custom_call.1} parent=5 // pred_fallthru
        _
      %p180 = scmp.le.s32.totalorder 1, %s14
      %p181 = scmp.lt.s32.totalorder %s14, 5
      %p182 = pnand %p180, %p181
      %p183 = pneg %p182
      // Predicated region
      $region29: #{tpu_custom_call.1} parent=5 // pred_check
        _
      $region30: #{tpu_custom_call.1} parent=5 // pred_check_branch
        %185 = sbr.rel (%p182) target = $region32
      $region31: #{tpu_custom_call.1} parent=5 // pred_region
        %s186 = ssub.s32 %s14, 1
        // Predicated region
        $region33: #{tpu_custom_call.1} parent=31 // pred_check
          %p187 = pneg %p35
        $region34: #{tpu_custom_call.1} parent=31 // pred_check_branch
          %189 = sbr.rel (%p187) target = $region36
        $region35: #{tpu_custom_call.1} parent=31 // pred_region
          %191 = dma.done [#allocation4], 512
        $region36: #{tpu_custom_call.1} parent=31 // pred_fallthru
          _
        %s192 = sand.u32 %s19, 1
        %s193 = scalar_lea.sflag [#allocation7], %s192
        %s194 = sand.u32 %s48, 1
        %s195 = smul.addr %s194, 1024
        %s196 = scalar_lea.vmem [#allocation6], %s195
        // Predicated region
        $region37: #{tpu_custom_call.1} parent=31 // pred_check
          %p197 = pneg %p61
        $region38: #{tpu_custom_call.1} parent=31 // pred_check_branch
          %199 = sbr.rel (%p197) target = $region40
        $region39: #{tpu_custom_call.1} parent=31 // pred_region
          %201 = dma.done %s193, 16384
        $region40: #{tpu_custom_call.1} parent=31 // pred_fallthru
          _
        %s202 = sand.u32 %s19, 1
        %s203 = scalar_lea.sflag [#allocation7], %s202
        %s204 = sand.u32 %s74, 1
        %s205 = smul.addr %s204, 4
        %s206 = scalar_lea.vmem [#allocation8], %s205
        // Predicated region
        $region41: #{tpu_custom_call.1} parent=31 // pred_check
          %p207 = pneg %p87
        $region42: #{tpu_custom_call.1} parent=31 // pred_check_branch
          %209 = sbr.rel (%p207) target = $region44
        $region43: #{tpu_custom_call.1} parent=31 // pred_region
          %211 = dma.done %s203, 64
        $region44: #{tpu_custom_call.1} parent=31 // pred_fallthru
          _
        %p212 = pneg %p35
        %p213 = pneg %p32
        %s214 = sand.u32 %s19, 1
        %s215 = scalar_lea.sflag [#allocation7], %s214
        %s216 = sand.u32 %s48, 1
        %s217 = smul.addr %s216, 1024
        %s218 = scalar_lea.vmem [#allocation6], %s217
        %p219 = pneg %p61
        %p220 = pneg %p58
        %s221 = sand.u32 %s19, 1
        %s222 = scalar_lea.sflag [#allocation7], %s221
        %s223 = sand.u32 %s74, 1
        %s224 = smul.addr %s223, 4
        %s225 = scalar_lea.vmem [#allocation8], %s224
        %p226 = pneg %p87
        %p227 = pneg %p84
        %p228 = pneg %p108
        %p229 = pneg %p105
        %p230 = scmp.eq.s32.totalorder %s19, 0
        // Predicated region
        $region45: #{tpu_custom_call.1} parent=31 // pred_check
          %p231 = pneg %p230
        $region46: #{tpu_custom_call.1} parent=31 // pred_check_branch
          %233 = sbr.rel (%p231) target = $region48
        $region47: #{tpu_custom_call.1} parent=31 // pred_region
          %v234 = vld [vmem:[#allocation3] sm:$0xff]
          %v235 = vld [vmem:[#allocation3 + $0x8] sm:$0xff]
          %v236 = vld [vmem:[#allocation3 + $0x10] sm:$0xff]
          %v237 = vld [vmem:[#allocation3 + $0x18] sm:$0xff]
          %v238 = vmul.f32 %v234, %v234
          %v239 = vmul.f32 %v235, %v235
          %v240 = vmul.f32 %v236, %v236
          %v241 = vmul.f32 %v237, %v237
          %v242 = vadd.f32 %v238, %v239
          %v243 = vadd.f32 %v242, %v240
          %v244 = vadd.f32 %v243, %v241
          %245 = vadd.xlane.f32.xlu0 %v244
          %v246 = vpop.xlane.xlu0 %245
          %v247 = vrcp.pop 512.0
          %v248 = vmul.f32 512.0, %v247
          %v249 = vsub.f32 1.0, %v248
          %v250 = vmul.f32 %v247, %v249
          %v251 = vadd.f32 %v247, %v250
          %vm252 = vweird.f32 %v247
          %v253 = vsel %vm252, %v247, %v251
          %v254 = vmul.f32 %v246, %v253
          %v255 = vadd.f32 %v254, 1e-08
          %v256 = vrsqrt.pop %v255
          %v257 = vmul.f32 %v256, %v255
          %v258 = vmul.f32 %v257, %v256
          %v259 = vmul.f32 0.5, %v258
          %v260 = vsub.f32 1.5, %v259
          %v261 = vmul.f32 %v256, %v260
          %vm262 = vweird.f32 %v255
          %vm263 = vweird.f32 %v256
          %vm264 = vmor %vm262, %vm263
          %v265 = vsel %vm264, %v256, %v261
          %v266 = vmul.f32 %v234, %v265
          %v267 = vmul.f32 %v235, %v265
          %v268 = vmul.f32 %v236, %v265
          %v269 = vmul.f32 %v237, %v265
          %270 = vst [vmem:[#allocation2] sm:$0xff] %v266
          %271 = vst [vmem:[#allocation2 + $0x8] sm:$0xff] %v267
          %272 = vst [vmem:[#allocation2 + $0x10] sm:$0xff] %v268
          %273 = vst [vmem:[#allocation2 + $0x18] sm:$0xff] %v269
        $region48: #{tpu_custom_call.1} parent=31 // pred_fallthru
          _
        %v274 = vld [vmem:[#allocation2] sm:$0xff]
        %v275 = vld [vmem:[#allocation2 + $0x8] sm:$0xff]
        %v276 = vld [vmem:[#allocation2 + $0x10] sm:$0xff]
        %v277 = vld [vmem:[#allocation2 + $0x18] sm:$0xff]
        %v278 = vld [vmem:[%s196] sm:$0xff]
        %v279 = vld [vmem:[%s196 + $0x8] sm:$0xff]
        %v280 = vld [vmem:[%s196 + $0x10] sm:$0xff]
        %v281 = vld [vmem:[%s196 + $0x18] sm:$0xff]
        %v282 = vld [vmem:[%s196 + $0x20] sm:$0xff]
        %v283 = vld [vmem:[%s196 + $0x28] sm:$0xff]
        %v284 = vld [vmem:[%s196 + $0x30] sm:$0xff]
        %v285 = vld [vmem:[%s196 + $0x38] sm:$0xff]
        %v286 = vld [vmem:[%s196 + $0x40] sm:$0xff]
        %v287 = vld [vmem:[%s196 + $0x48] sm:$0xff]
        %v288 = vld [vmem:[%s196 + $0x50] sm:$0xff]
        %v289 = vld [vmem:[%s196 + $0x58] sm:$0xff]
        %v290 = vld [vmem:[%s196 + $0x60] sm:$0xff]
        %v291 = vld [vmem:[%s196 + $0x68] sm:$0xff]
        %v292 = vld [vmem:[%s196 + $0x70] sm:$0xff]
        %v293 = vld [vmem:[%s196 + $0x78] sm:$0xff]
        %v294 = vld [vmem:[%s196 + $0x80] sm:$0xff]
        %v295 = vld [vmem:[%s196 + $0x88] sm:$0xff]
        %v296 = vld [vmem:[%s196 + $0x90] sm:$0xff]
        %v297 = vld [vmem:[%s196 + $0x98] sm:$0xff]
        %v298 = vld [vmem:[%s196 + $0xa0] sm:$0xff]
        %v299 = vld [vmem:[%s196 + $0xa8] sm:$0xff]
        %v300 = vld [vmem:[%s196 + $0xb0] sm:$0xff]
        %v301 = vld [vmem:[%s196 + $0xb8] sm:$0xff]
        %v302 = vld [vmem:[%s196 + $0xc0] sm:$0xff]
        %v303 = vld [vmem:[%s196 + $0xc8] sm:$0xff]
        %v304 = vld [vmem:[%s196 + $0xd0] sm:$0xff]
        %v305 = vld [vmem:[%s196 + $0xd8] sm:$0xff]
        %v306 = vld [vmem:[%s196 + $0xe0] sm:$0xff]
        %v307 = vld [vmem:[%s196 + $0xe8] sm:$0xff]
        %v308 = vld [vmem:[%s196 + $0xf0] sm:$0xff]
        %v309 = vld [vmem:[%s196 + $0xf8] sm:$0xff]
        %v310 = vld [vmem:[%s196 + $0x100] sm:$0xff]
        %v311 = vld [vmem:[%s196 + $0x108] sm:$0xff]
        %v312 = vld [vmem:[%s196 + $0x110] sm:$0xff]
        %v313 = vld [vmem:[%s196 + $0x118] sm:$0xff]
        %v314 = vld [vmem:[%s196 + $0x120] sm:$0xff]
        %v315 = vld [vmem:[%s196 + $0x128] sm:$0xff]
        %v316 = vld [vmem:[%s196 + $0x130] sm:$0xff]
        %v317 = vld [vmem:[%s196 + $0x138] sm:$0xff]
        %v318 = vld [vmem:[%s196 + $0x140] sm:$0xff]
        %v319 = vld [vmem:[%s196 + $0x148] sm:$0xff]
        %v320 = vld [vmem:[%s196 + $0x150] sm:$0xff]
        %v321 = vld [vmem:[%s196 + $0x158] sm:$0xff]
        %v322 = vld [vmem:[%s196 + $0x160] sm:$0xff]
        %v323 = vld [vmem:[%s196 + $0x168] sm:$0xff]
        %v324 = vld [vmem:[%s196 + $0x170] sm:$0xff]
        %v325 = vld [vmem:[%s196 + $0x178] sm:$0xff]
        %v326 = vld [vmem:[%s196 + $0x180] sm:$0xff]
        %v327 = vld [vmem:[%s196 + $0x188] sm:$0xff]
        %v328 = vld [vmem:[%s196 + $0x190] sm:$0xff]
        %v329 = vld [vmem:[%s196 + $0x198] sm:$0xff]
        %v330 = vld [vmem:[%s196 + $0x1a0] sm:$0xff]
        %v331 = vld [vmem:[%s196 + $0x1a8] sm:$0xff]
        %v332 = vld [vmem:[%s196 + $0x1b0] sm:$0xff]
        %v333 = vld [vmem:[%s196 + $0x1b8] sm:$0xff]
        %v334 = vld [vmem:[%s196 + $0x1c0] sm:$0xff]
        %v335 = vld [vmem:[%s196 + $0x1c8] sm:$0xff]
        %v336 = vld [vmem:[%s196 + $0x1d0] sm:$0xff]
        %v337 = vld [vmem:[%s196 + $0x1d8] sm:$0xff]
        %v338 = vld [vmem:[%s196 + $0x1e0] sm:$0xff]
        %v339 = vld [vmem:[%s196 + $0x1e8] sm:$0xff]
        %v340 = vld [vmem:[%s196 + $0x1f0] sm:$0xff]
        %v341 = vld [vmem:[%s196 + $0x1f8] sm:$0xff]
        %v342 = vld [vmem:[%s196 + $0x200] sm:$0xff]
        %v343 = vld [vmem:[%s196 + $0x208] sm:$0xff]
        %v344 = vld [vmem:[%s196 + $0x210] sm:$0xff]
        %v345 = vld [vmem:[%s196 + $0x218] sm:$0xff]
        %v346 = vld [vmem:[%s196 + $0x220] sm:$0xff]
        %v347 = vld [vmem:[%s196 + $0x228] sm:$0xff]
        %v348 = vld [vmem:[%s196 + $0x230] sm:$0xff]
        %v349 = vld [vmem:[%s196 + $0x238] sm:$0xff]
        %v350 = vld [vmem:[%s196 + $0x240] sm:$0xff]
        %v351 = vld [vmem:[%s196 + $0x248] sm:$0xff]
        %v352 = vld [vmem:[%s196 + $0x250] sm:$0xff]
        %v353 = vld [vmem:[%s196 + $0x258] sm:$0xff]
        %v354 = vld [vmem:[%s196 + $0x260] sm:$0xff]
        %v355 = vld [vmem:[%s196 + $0x268] sm:$0xff]
        %v356 = vld [vmem:[%s196 + $0x270] sm:$0xff]
        %v357 = vld [vmem:[%s196 + $0x278] sm:$0xff]
        %v358 = vld [vmem:[%s196 + $0x280] sm:$0xff]
        %v359 = vld [vmem:[%s196 + $0x288] sm:$0xff]
        %v360 = vld [vmem:[%s196 + $0x290] sm:$0xff]
        %v361 = vld [vmem:[%s196 + $0x298] sm:$0xff]
        %v362 = vld [vmem:[%s196 + $0x2a0] sm:$0xff]
        %v363 = vld [vmem:[%s196 + $0x2a8] sm:$0xff]
        %v364 = vld [vmem:[%s196 + $0x2b0] sm:$0xff]
        %v365 = vld [vmem:[%s196 + $0x2b8] sm:$0xff]
        %v366 = vld [vmem:[%s196 + $0x2c0] sm:$0xff]
        %v367 = vld [vmem:[%s196 + $0x2c8] sm:$0xff]
        %v368 = vld [vmem:[%s196 + $0x2d0] sm:$0xff]
        %v369 = vld [vmem:[%s196 + $0x2d8] sm:$0xff]
        %v370 = vld [vmem:[%s196 + $0x2e0] sm:$0xff]
        %v371 = vld [vmem:[%s196 + $0x2e8] sm:$0xff]
        %v372 = vld [vmem:[%s196 + $0x2f0] sm:$0xff]
        %v373 = vld [vmem:[%s196 + $0x2f8] sm:$0xff]
        %v374 = vld [vmem:[%s196 + $0x300] sm:$0xff]
        %v375 = vld [vmem:[%s196 + $0x308] sm:$0xff]
        %v376 = vld [vmem:[%s196 + $0x310] sm:$0xff]
        %v377 = vld [vmem:[%s196 + $0x318] sm:$0xff]
        %v378 = vld [vmem:[%s196 + $0x320] sm:$0xff]
        %v379 = vld [vmem:[%s196 + $0x328] sm:$0xff]
        %v380 = vld [vmem:[%s196 + $0x330] sm:$0xff]
        %v381 = vld [vmem:[%s196 + $0x338] sm:$0xff]
        %v382 = vld [vmem:[%s196 + $0x340] sm:$0xff]
        %v383 = vld [vmem:[%s196 + $0x348] sm:$0xff]
        %v384 = vld [vmem:[%s196 + $0x350] sm:$0xff]
        %v385 = vld [vmem:[%s196 + $0x358] sm:$0xff]
        %v386 = vld [vmem:[%s196 + $0x360] sm:$0xff]
        %v387 = vld [vmem:[%s196 + $0x368] sm:$0xff]
        %v388 = vld [vmem:[%s196 + $0x370] sm:$0xff]
        %v389 = vld [vmem:[%s196 + $0x378] sm:$0xff]
        %v390 = vld [vmem:[%s196 + $0x380] sm:$0xff]
        %v391 = vld [vmem:[%s196 + $0x388] sm:$0xff]
        %v392 = vld [vmem:[%s196 + $0x390] sm:$0xff]
        %v393 = vld [vmem:[%s196 + $0x398] sm:$0xff]
        %v394 = vld [vmem:[%s196 + $0x3a0] sm:$0xff]
        %v395 = vld [vmem:[%s196 + $0x3a8] sm:$0xff]
        %v396 = vld [vmem:[%s196 + $0x3b0] sm:$0xff]
        %v397 = vld [vmem:[%s196 + $0x3b8] sm:$0xff]
        %v398 = vld [vmem:[%s196 + $0x3c0] sm:$0xff]
        %v399 = vld [vmem:[%s196 + $0x3c8] sm:$0xff]
        %v400 = vld [vmem:[%s196 + $0x3d0] sm:$0xff]
        %v401 = vld [vmem:[%s196 + $0x3d8] sm:$0xff]
        %v402 = vld [vmem:[%s196 + $0x3e0] sm:$0xff]
        %v403 = vld [vmem:[%s196 + $0x3e8] sm:$0xff]
        %v404 = vld [vmem:[%s196 + $0x3f0] sm:$0xff]
        %v405 = vld [vmem:[%s196 + $0x3f8] sm:$0xff]
        %v406 = vld [vmem:[%s206] sm:$0xf]
        %v407 = vpack.c.bf16 %v274, %v274
        %v408 = vpack.c.bf16 %v275, %v275
        %v409 = vpack.c.bf16 %v276, %v276
        %v410 = vpack.c.bf16 %v277, %v277
        %v412 = vperm.slane %v406, 0
        %v413 = vperm.slane %v406, 1
        %v414 = vperm.slane %v406, 2
        %v415 = vperm.slane %v406, 3
        %v548 = vunpack.c.l.b16 %v278
        %v549 = vunpack.c.h.b16 %v278
        %v550 = vunpack.c.l.b16 %v279
        %v551 = vunpack.c.h.b16 %v279
        %v552 = vunpack.c.l.b16 %v280
        %v553 = vunpack.c.h.b16 %v280
        %v554 = vunpack.c.l.b16 %v281
        %v555 = vunpack.c.h.b16 %v281
        %v556 = vunpack.c.l.b16 %v282
        %v557 = vunpack.c.h.b16 %v282
        %v558 = vunpack.c.l.b16 %v283
        %v559 = vunpack.c.h.b16 %v283
        %v560 = vunpack.c.l.b16 %v284
        %v561 = vunpack.c.h.b16 %v284
        %v562 = vunpack.c.l.b16 %v285
        %v563 = vunpack.c.h.b16 %v285
        %v564 = vunpack.c.l.b16 %v286
        %v565 = vunpack.c.h.b16 %v286
        %v566 = vunpack.c.l.b16 %v287
        %v567 = vunpack.c.h.b16 %v287
        %v568 = vunpack.c.l.b16 %v288
        %v569 = vunpack.c.h.b16 %v288
        %v570 = vunpack.c.l.b16 %v289
        %v571 = vunpack.c.h.b16 %v289
        %v572 = vunpack.c.l.b16 %v290
        %v573 = vunpack.c.h.b16 %v290
        %v574 = vunpack.c.l.b16 %v291
        %v575 = vunpack.c.h.b16 %v291
        %v576 = vunpack.c.l.b16 %v292
        %v577 = vunpack.c.h.b16 %v292
        %v578 = vunpack.c.l.b16 %v293
        %v579 = vunpack.c.h.b16 %v293
        %v580 = vunpack.c.l.b16 %v294
        %v581 = vunpack.c.h.b16 %v294
        %v582 = vunpack.c.l.b16 %v295
        %v583 = vunpack.c.h.b16 %v295
        %v584 = vunpack.c.l.b16 %v296
        %v585 = vunpack.c.h.b16 %v296
        %v586 = vunpack.c.l.b16 %v297
        %v587 = vunpack.c.h.b16 %v297
        %v588 = vunpack.c.l.b16 %v298
        %v589 = vunpack.c.h.b16 %v298
        %v590 = vunpack.c.l.b16 %v299
        %v591 = vunpack.c.h.b16 %v299
        %v592 = vunpack.c.l.b16 %v300
        %v593 = vunpack.c.h.b16 %v300
        %v594 = vunpack.c.l.b16 %v301
        %v595 = vunpack.c.h.b16 %v301
        %v596 = vunpack.c.l.b16 %v302
        %v597 = vunpack.c.h.b16 %v302
        %v598 = vunpack.c.l.b16 %v303
        %v599 = vunpack.c.h.b16 %v303
        %v600 = vunpack.c.l.b16 %v304
        %v601 = vunpack.c.h.b16 %v304
        %v602 = vunpack.c.l.b16 %v305
        %v603 = vunpack.c.h.b16 %v305
        %v604 = vunpack.c.l.b16 %v306
        %v605 = vunpack.c.h.b16 %v306
        %v606 = vunpack.c.l.b16 %v307
        %v607 = vunpack.c.h.b16 %v307
        %v608 = vunpack.c.l.b16 %v308
        %v609 = vunpack.c.h.b16 %v308
        %v610 = vunpack.c.l.b16 %v309
        %v611 = vunpack.c.h.b16 %v309
        %v612 = vunpack.c.l.b16 %v310
        %v613 = vunpack.c.h.b16 %v310
        %v614 = vunpack.c.l.b16 %v311
        %v615 = vunpack.c.h.b16 %v311
        %v616 = vunpack.c.l.b16 %v312
        %v617 = vunpack.c.h.b16 %v312
        %v618 = vunpack.c.l.b16 %v313
        %v619 = vunpack.c.h.b16 %v313
        %v620 = vunpack.c.l.b16 %v314
        %v621 = vunpack.c.h.b16 %v314
        %v622 = vunpack.c.l.b16 %v315
        %v623 = vunpack.c.h.b16 %v315
        %v624 = vunpack.c.l.b16 %v316
        %v625 = vunpack.c.h.b16 %v316
        %v626 = vunpack.c.l.b16 %v317
        %v627 = vunpack.c.h.b16 %v317
        %v628 = vunpack.c.l.b16 %v318
        %v629 = vunpack.c.h.b16 %v318
        %v630 = vunpack.c.l.b16 %v319
        %v631 = vunpack.c.h.b16 %v319
        %v632 = vunpack.c.l.b16 %v320
        %v633 = vunpack.c.h.b16 %v320
        %v634 = vunpack.c.l.b16 %v321
        %v635 = vunpack.c.h.b16 %v321
        %v636 = vunpack.c.l.b16 %v322
        %v637 = vunpack.c.h.b16 %v322
        %v638 = vunpack.c.l.b16 %v323
        %v639 = vunpack.c.h.b16 %v323
        %v640 = vunpack.c.l.b16 %v324
        %v641 = vunpack.c.h.b16 %v324
        %v642 = vunpack.c.l.b16 %v325
        %v643 = vunpack.c.h.b16 %v325
        %v644 = vunpack.c.l.b16 %v326
        %v645 = vunpack.c.h.b16 %v326
        %v646 = vunpack.c.l.b16 %v327
        %v647 = vunpack.c.h.b16 %v327
        %v648 = vunpack.c.l.b16 %v328
        %v649 = vunpack.c.h.b16 %v328
        %v650 = vunpack.c.l.b16 %v329
        %v651 = vunpack.c.h.b16 %v329
        %v652 = vunpack.c.l.b16 %v330
        %v653 = vunpack.c.h.b16 %v330
        %v654 = vunpack.c.l.b16 %v331
        %v655 = vunpack.c.h.b16 %v331
        %v656 = vunpack.c.l.b16 %v332
        %v657 = vunpack.c.h.b16 %v332
        %v658 = vunpack.c.l.b16 %v333
        %v659 = vunpack.c.h.b16 %v333
        %v660 = vunpack.c.l.b16 %v334
        %v661 = vunpack.c.h.b16 %v334
        %v662 = vunpack.c.l.b16 %v335
        %v663 = vunpack.c.h.b16 %v335
        %v664 = vunpack.c.l.b16 %v336
        %v665 = vunpack.c.h.b16 %v336
        %v666 = vunpack.c.l.b16 %v337
        %v667 = vunpack.c.h.b16 %v337
        %v668 = vunpack.c.l.b16 %v338
        %v669 = vunpack.c.h.b16 %v338
        %v670 = vunpack.c.l.b16 %v339
        %v671 = vunpack.c.h.b16 %v339
        %v672 = vunpack.c.l.b16 %v340
        %v673 = vunpack.c.h.b16 %v340
        %v674 = vunpack.c.l.b16 %v341
        %v675 = vunpack.c.h.b16 %v341
        %v676 = vunpack.c.l.b16 %v342
        %v677 = vunpack.c.h.b16 %v342
        %v678 = vunpack.c.l.b16 %v343
        %v679 = vunpack.c.h.b16 %v343
        %v680 = vunpack.c.l.b16 %v344
        %v681 = vunpack.c.h.b16 %v344
        %v682 = vunpack.c.l.b16 %v345
        %v683 = vunpack.c.h.b16 %v345
        %v684 = vunpack.c.l.b16 %v346
        %v685 = vunpack.c.h.b16 %v346
        %v686 = vunpack.c.l.b16 %v347
        %v687 = vunpack.c.h.b16 %v347
        %v688 = vunpack.c.l.b16 %v348
        %v689 = vunpack.c.h.b16 %v348
        %v690 = vunpack.c.l.b16 %v349
        %v691 = vunpack.c.h.b16 %v349
        %v692 = vunpack.c.l.b16 %v350
        %v693 = vunpack.c.h.b16 %v350
        %v694 = vunpack.c.l.b16 %v351
        %v695 = vunpack.c.h.b16 %v351
        %v696 = vunpack.c.l.b16 %v352
        %v697 = vunpack.c.h.b16 %v352
        %v698 = vunpack.c.l.b16 %v353
        %v699 = vunpack.c.h.b16 %v353
        %v700 = vunpack.c.l.b16 %v354
        %v701 = vunpack.c.h.b16 %v354
        %v702 = vunpack.c.l.b16 %v355
        %v703 = vunpack.c.h.b16 %v355
        %v704 = vunpack.c.l.b16 %v356
        %v705 = vunpack.c.h.b16 %v356
        %v706 = vunpack.c.l.b16 %v357
        %v707 = vunpack.c.h.b16 %v357
        %v708 = vunpack.c.l.b16 %v358
        %v709 = vunpack.c.h.b16 %v358
        %v710 = vunpack.c.l.b16 %v359
        %v711 = vunpack.c.h.b16 %v359
        %v712 = vunpack.c.l.b16 %v360
        %v713 = vunpack.c.h.b16 %v360
        %v714 = vunpack.c.l.b16 %v361
        %v715 = vunpack.c.h.b16 %v361
        %v716 = vunpack.c.l.b16 %v362
        %v717 = vunpack.c.h.b16 %v362
        %v718 = vunpack.c.l.b16 %v363
        %v719 = vunpack.c.h.b16 %v363
        %v720 = vunpack.c.l.b16 %v364
        %v721 = vunpack.c.h.b16 %v364
        %v722 = vunpack.c.l.b16 %v365
        %v723 = vunpack.c.h.b16 %v365
        %v724 = vunpack.c.l.b16 %v366
        %v725 = vunpack.c.h.b16 %v366
        %v726 = vunpack.c.l.b16 %v367
        %v727 = vunpack.c.h.b16 %v367
        %v728 = vunpack.c.l.b16 %v368
        %v729 = vunpack.c.h.b16 %v368
        %v730 = vunpack.c.l.b16 %v369
        %v731 = vunpack.c.h.b16 %v369
        %v732 = vunpack.c.l.b16 %v370
        %v733 = vunpack.c.h.b16 %v370
        %v734 = vunpack.c.l.b16 %v371
        %v735 = vunpack.c.h.b16 %v371
        %v736 = vunpack.c.l.b16 %v372
        %v737 = vunpack.c.h.b16 %v372
        %v738 = vunpack.c.l.b16 %v373
        %v739 = vunpack.c.h.b16 %v373
        %v740 = vunpack.c.l.b16 %v374
        %v741 = vunpack.c.h.b16 %v374
        %v742 = vunpack.c.l.b16 %v375
        %v743 = vunpack.c.h.b16 %v375
        %v744 = vunpack.c.l.b16 %v376
        %v745 = vunpack.c.h.b16 %v376
        %v746 = vunpack.c.l.b16 %v377
        %v747 = vunpack.c.h.b16 %v377
        %v748 = vunpack.c.l.b16 %v378
        %v749 = vunpack.c.h.b16 %v378
        %v750 = vunpack.c.l.b16 %v379
        %v751 = vunpack.c.h.b16 %v379
        %v752 = vunpack.c.l.b16 %v380
        %v753 = vunpack.c.h.b16 %v380
        %v754 = vunpack.c.l.b16 %v381
        %v755 = vunpack.c.h.b16 %v381
        %v756 = vunpack.c.l.b16 %v382
        %v757 = vunpack.c.h.b16 %v382
        %v758 = vunpack.c.l.b16 %v383
        %v759 = vunpack.c.h.b16 %v383
        %v760 = vunpack.c.l.b16 %v384
        %v761 = vunpack.c.h.b16 %v384
        %v762 = vunpack.c.l.b16 %v385
        %v763 = vunpack.c.h.b16 %v385
        %v764 = vunpack.c.l.b16 %v386
        %v765 = vunpack.c.h.b16 %v386
        %v766 = vunpack.c.l.b16 %v387
        %v767 = vunpack.c.h.b16 %v387
        %v768 = vunpack.c.l.b16 %v388
        %v769 = vunpack.c.h.b16 %v388
        %v770 = vunpack.c.l.b16 %v389
        %v771 = vunpack.c.h.b16 %v389
        %v772 = vunpack.c.l.b16 %v390
        %v773 = vunpack.c.h.b16 %v390
        %v774 = vunpack.c.l.b16 %v391
        %v775 = vunpack.c.h.b16 %v391
        %v776 = vunpack.c.l.b16 %v392
        %v777 = vunpack.c.h.b16 %v392
        %v778 = vunpack.c.l.b16 %v393
        %v779 = vunpack.c.h.b16 %v393
        %v780 = vunpack.c.l.b16 %v394
        %v781 = vunpack.c.h.b16 %v394
        %v782 = vunpack.c.l.b16 %v395
        %v783 = vunpack.c.h.b16 %v395
        %v784 = vunpack.c.l.b16 %v396
        %v785 = vunpack.c.h.b16 %v396
        %v786 = vunpack.c.l.b16 %v397
        %v787 = vunpack.c.h.b16 %v397
        %v788 = vunpack.c.l.b16 %v398
        %v789 = vunpack.c.h.b16 %v398
        %v790 = vunpack.c.l.b16 %v399
        %v791 = vunpack.c.h.b16 %v399
        %v792 = vunpack.c.l.b16 %v400
        %v793 = vunpack.c.h.b16 %v400
        %v794 = vunpack.c.l.b16 %v401
        %v795 = vunpack.c.h.b16 %v401
        %v796 = vunpack.c.l.b16 %v402
        %v797 = vunpack.c.h.b16 %v402
        %v798 = vunpack.c.l.b16 %v403
        %v799 = vunpack.c.h.b16 %v403
        %v800 = vunpack.c.l.b16 %v404
        %v801 = vunpack.c.h.b16 %v404
        %v802 = vunpack.c.l.b16 %v405
        %v803 = vunpack.c.h.b16 %v405
        %v804 = vpack.c.b16 %v552, %v548
        %v805 = vpack.c.b16 %v553, %v549
        %v806 = vpack.c.b16 %v554, %v550
        %v807 = vpack.c.b16 %v555, %v551
        %v808 = vpack.c.b16 %v560, %v556
        %v809 = vpack.c.b16 %v561, %v557
        %v810 = vpack.c.b16 %v562, %v558
        %v811 = vpack.c.b16 %v563, %v559
        %v812 = vpack.c.b16 %v568, %v564
        %v813 = vpack.c.b16 %v569, %v565
        %v814 = vpack.c.b16 %v570, %v566
        %v815 = vpack.c.b16 %v571, %v567
        %v816 = vpack.c.b16 %v576, %v572
        %v817 = vpack.c.b16 %v577, %v573
        %v818 = vpack.c.b16 %v578, %v574
        %v819 = vpack.c.b16 %v579, %v575
        %v820 = vpack.c.b16 %v584, %v580
        %v821 = vpack.c.b16 %v585, %v581
        %v822 = vpack.c.b16 %v586, %v582
        %v823 = vpack.c.b16 %v587, %v583
        %v824 = vpack.c.b16 %v592, %v588
        %v825 = vpack.c.b16 %v593, %v589
        %v826 = vpack.c.b16 %v594, %v590
        %v827 = vpack.c.b16 %v595, %v591
        %v828 = vpack.c.b16 %v600, %v596
        %v829 = vpack.c.b16 %v601, %v597
        %v830 = vpack.c.b16 %v602, %v598
        %v831 = vpack.c.b16 %v603, %v599
        %v832 = vpack.c.b16 %v608, %v604
        %v833 = vpack.c.b16 %v609, %v605
        %v834 = vpack.c.b16 %v610, %v606
        %v835 = vpack.c.b16 %v611, %v607
        %v836 = vpack.c.b16 %v616, %v612
        %v837 = vpack.c.b16 %v617, %v613
        %v838 = vpack.c.b16 %v618, %v614
        %v839 = vpack.c.b16 %v619, %v615
        %v840 = vpack.c.b16 %v624, %v620
        %v841 = vpack.c.b16 %v625, %v621
        %v842 = vpack.c.b16 %v626, %v622
        %v843 = vpack.c.b16 %v627, %v623
        %v844 = vpack.c.b16 %v632, %v628
        %v845 = vpack.c.b16 %v633, %v629
        %v846 = vpack.c.b16 %v634, %v630
        %v847 = vpack.c.b16 %v635, %v631
        %v848 = vpack.c.b16 %v640, %v636
        %v849 = vpack.c.b16 %v641, %v637
        %v850 = vpack.c.b16 %v642, %v638
        %v851 = vpack.c.b16 %v643, %v639
        %v852 = vpack.c.b16 %v648, %v644
        %v853 = vpack.c.b16 %v649, %v645
        %v854 = vpack.c.b16 %v650, %v646
        %v855 = vpack.c.b16 %v651, %v647
        %v856 = vpack.c.b16 %v656, %v652
        %v857 = vpack.c.b16 %v657, %v653
        %v858 = vpack.c.b16 %v658, %v654
        %v859 = vpack.c.b16 %v659, %v655
        %v860 = vpack.c.b16 %v664, %v660
        %v861 = vpack.c.b16 %v665, %v661
        %v862 = vpack.c.b16 %v666, %v662
        %v863 = vpack.c.b16 %v667, %v663
        %v864 = vpack.c.b16 %v672, %v668
        %v865 = vpack.c.b16 %v673, %v669
        %v866 = vpack.c.b16 %v674, %v670
        %v867 = vpack.c.b16 %v675, %v671
        %v868 = vpack.c.b16 %v680, %v676
        %v869 = vpack.c.b16 %v681, %v677
        %v870 = vpack.c.b16 %v682, %v678
        %v871 = vpack.c.b16 %v683, %v679
        %v872 = vpack.c.b16 %v688, %v684
        %v873 = vpack.c.b16 %v689, %v685
        %v874 = vpack.c.b16 %v690, %v686
        %v875 = vpack.c.b16 %v691, %v687
        %v876 = vpack.c.b16 %v696, %v692
        %v877 = vpack.c.b16 %v697, %v693
        %v878 = vpack.c.b16 %v698, %v694
        %v879 = vpack.c.b16 %v699, %v695
        %v880 = vpack.c.b16 %v704, %v700
        %v881 = vpack.c.b16 %v705, %v701
        %v882 = vpack.c.b16 %v706, %v702
        %v883 = vpack.c.b16 %v707, %v703
        %v884 = vpack.c.b16 %v712, %v708
        %v885 = vpack.c.b16 %v713, %v709
        %v886 = vpack.c.b16 %v714, %v710
        %v887 = vpack.c.b16 %v715, %v711
        %v888 = vpack.c.b16 %v720, %v716
        %v889 = vpack.c.b16 %v721, %v717
        %v890 = vpack.c.b16 %v722, %v718
        %v891 = vpack.c.b16 %v723, %v719
        %v892 = vpack.c.b16 %v728, %v724
        %v893 = vpack.c.b16 %v729, %v725
        %v894 = vpack.c.b16 %v730, %v726
        %v895 = vpack.c.b16 %v731, %v727
        %v896 = vpack.c.b16 %v736, %v732
        %v897 = vpack.c.b16 %v737, %v733
        %v898 = vpack.c.b16 %v738, %v734
        %v899 = vpack.c.b16 %v739, %v735
        %v900 = vpack.c.b16 %v744, %v740
        %v901 = vpack.c.b16 %v745, %v741
        %v902 = vpack.c.b16 %v746, %v742
        %v903 = vpack.c.b16 %v747, %v743
        %v904 = vpack.c.b16 %v752, %v748
        %v905 = vpack.c.b16 %v753, %v749
        %v906 = vpack.c.b16 %v754, %v750
        %v907 = vpack.c.b16 %v755, %v751
        %v908 = vpack.c.b16 %v760, %v756
        %v909 = vpack.c.b16 %v761, %v757
        %v910 = vpack.c.b16 %v762, %v758
        %v911 = vpack.c.b16 %v763, %v759
        %v912 = vpack.c.b16 %v768, %v764
        %v913 = vpack.c.b16 %v769, %v765
        %v914 = vpack.c.b16 %v770, %v766
        %v915 = vpack.c.b16 %v771, %v767
        %v916 = vpack.c.b16 %v776, %v772
        %v917 = vpack.c.b16 %v777, %v773
        %v918 = vpack.c.b16 %v778, %v774
        %v919 = vpack.c.b16 %v779, %v775
        %v920 = vpack.c.b16 %v784, %v780
        %v921 = vpack.c.b16 %v785, %v781
        %v922 = vpack.c.b16 %v786, %v782
        %v923 = vpack.c.b16 %v787, %v783
        %v924 = vpack.c.b16 %v792, %v788
        %v925 = vpack.c.b16 %v793, %v789
        %v926 = vpack.c.b16 %v794, %v790
        %v927 = vpack.c.b16 %v795, %v791
        %v928 = vpack.c.b16 %v800, %v796
        %v929 = vpack.c.b16 %v801, %v797
        %v930 = vpack.c.b16 %v802, %v798
        %v931 = vpack.c.b16 %v803, %v799
        %1060 = vmatpush.bf16.msra.mxu0 %v832
        %1061 = vmatpush.bf16.msra.mxu0 %v828
        %1062 = vmatpush.bf16.msra.mxu0 %v824
        %1063 = vmatpush.bf16.msra.mxu0 %v820
        %1064 = vmatpush.bf16.msra.mxu0 %v816
        %1065 = vmatpush.bf16.msra.mxu0 %v812
        %1066 = vmatpush.bf16.msra.mxu0 %v808
        %1067 = vmatpush.bf16.msra.mxu0 %v804
        %1068 = vmatmul.bf16.gmra.mxu0 %v407
        %v1069 = vpop.f32.mrf.mxu0
        %v1070 = vadd.f32 %v412, %v1069
        %v1071 = vpop.f32.mrf.mxu0
        %1072 = vdwg.mxu0
        %1073 = vmatpush.bf16.msra.mxu0 %v864
        %1074 = vmatpush.bf16.msra.mxu0 %v860
        %1075 = vmatpush.bf16.msra.mxu0 %v856
        %1076 = vmatpush.bf16.msra.mxu0 %v852
        %1077 = vmatpush.bf16.msra.mxu0 %v848
        %1078 = vmatpush.bf16.msra.mxu0 %v844
        %1079 = vmatpush.bf16.msra.mxu0 %v840
        %1080 = vmatpush.bf16.msra.mxu0 %v836
        %1081 = vmatmul.bf16.gmra.mxu0 %v408
        %v1082 = vpop.f32.mrf.mxu0
        %v1083 = vadd.f32 %v1070, %v1082
        %v1084 = vpop.f32.mrf.mxu0
        %1085 = vdwg.mxu0
        %1086 = vmatpush.bf16.msra.mxu0 %v896
        %1087 = vmatpush.bf16.msra.mxu0 %v892
        %1088 = vmatpush.bf16.msra.mxu0 %v888
        %1089 = vmatpush.bf16.msra.mxu0 %v884
        %1090 = vmatpush.bf16.msra.mxu0 %v880
        %1091 = vmatpush.bf16.msra.mxu0 %v876
        %1092 = vmatpush.bf16.msra.mxu0 %v872
        %1093 = vmatpush.bf16.msra.mxu0 %v868
        %1094 = vmatmul.bf16.gmra.mxu0 %v409
        %v1095 = vpop.f32.mrf.mxu0
        %v1096 = vadd.f32 %v1083, %v1095
        %v1097 = vpop.f32.mrf.mxu0
        %1098 = vdwg.mxu0
        %1099 = vmatpush.bf16.msra.mxu0 %v928
        %1100 = vmatpush.bf16.msra.mxu0 %v924
        %1101 = vmatpush.bf16.msra.mxu0 %v920
        %1102 = vmatpush.bf16.msra.mxu0 %v916
        %1103 = vmatpush.bf16.msra.mxu0 %v912
        %1104 = vmatpush.bf16.msra.mxu0 %v908
        %1105 = vmatpush.bf16.msra.mxu0 %v904
        %1106 = vmatpush.bf16.msra.mxu0 %v900
        %1107 = vmatmul.bf16.gmra.mxu0 %v410
        %v1108 = vpop.f32.mrf.mxu0
        %v1109 = vadd.f32 %v1096, %v1108
        %v1110 = vpop.f32.mrf.mxu0
        %1111 = vdwg.mxu0
        %1112 = vmatpush.bf16.msra.mxu0 %v833
        %1113 = vmatpush.bf16.msra.mxu0 %v829
        %1114 = vmatpush.bf16.msra.mxu0 %v825
        %1115 = vmatpush.bf16.msra.mxu0 %v821
        %1116 = vmatpush.bf16.msra.mxu0 %v817
        %1117 = vmatpush.bf16.msra.mxu0 %v813
        %1118 = vmatpush.bf16.msra.mxu0 %v809
        %1119 = vmatpush.bf16.msra.mxu0 %v805
        %1120 = vmatmul.bf16.gmra.mxu0 %v407
        %v1121 = vpop.f32.mrf.mxu0
        %v1122 = vadd.f32 %v413, %v1121
        %v1123 = vpop.f32.mrf.mxu0
        %1124 = vdwg.mxu0
        %1125 = vmatpush.bf16.msra.mxu0 %v865
        %1126 = vmatpush.bf16.msra.mxu0 %v861
        %1127 = vmatpush.bf16.msra.mxu0 %v857
        %1128 = vmatpush.bf16.msra.mxu0 %v853
        %1129 = vmatpush.bf16.msra.mxu0 %v849
        %1130 = vmatpush.bf16.msra.mxu0 %v845
        %1131 = vmatpush.bf16.msra.mxu0 %v841
        %1132 = vmatpush.bf16.msra.mxu0 %v837
        %1133 = vmatmul.bf16.gmra.mxu0 %v408
        %v1134 = vpop.f32.mrf.mxu0
        %v1135 = vadd.f32 %v1122, %v1134
        %v1136 = vpop.f32.mrf.mxu0
        %1137 = vdwg.mxu0
        %1138 = vmatpush.bf16.msra.mxu0 %v897
        %1139 = vmatpush.bf16.msra.mxu0 %v893
        %1140 = vmatpush.bf16.msra.mxu0 %v889
        %1141 = vmatpush.bf16.msra.mxu0 %v885
        %1142 = vmatpush.bf16.msra.mxu0 %v881
        %1143 = vmatpush.bf16.msra.mxu0 %v877
        %1144 = vmatpush.bf16.msra.mxu0 %v873
        %1145 = vmatpush.bf16.msra.mxu0 %v869
        %1146 = vmatmul.bf16.gmra.mxu0 %v409
        %v1147 = vpop.f32.mrf.mxu0
        %v1148 = vadd.f32 %v1135, %v1147
        %v1149 = vpop.f32.mrf.mxu0
        %1150 = vdwg.mxu0
        %1151 = vmatpush.bf16.msra.mxu0 %v929
        %1152 = vmatpush.bf16.msra.mxu0 %v925
        %1153 = vmatpush.bf16.msra.mxu0 %v921
        %1154 = vmatpush.bf16.msra.mxu0 %v917
        %1155 = vmatpush.bf16.msra.mxu0 %v913
        %1156 = vmatpush.bf16.msra.mxu0 %v909
        %1157 = vmatpush.bf16.msra.mxu0 %v905
        %1158 = vmatpush.bf16.msra.mxu0 %v901
        %1159 = vmatmul.bf16.gmra.mxu0 %v410
        %v1160 = vpop.f32.mrf.mxu0
        %v1161 = vadd.f32 %v1148, %v1160
        %v1162 = vpop.f32.mrf.mxu0
        %1163 = vdwg.mxu0
        %1164 = vmatpush.bf16.msra.mxu0 %v834
        %1165 = vmatpush.bf16.msra.mxu0 %v830
        %1166 = vmatpush.bf16.msra.mxu0 %v826
        %1167 = vmatpush.bf16.msra.mxu0 %v822
        %1168 = vmatpush.bf16.msra.mxu0 %v818
        %1169 = vmatpush.bf16.msra.mxu0 %v814
        %1170 = vmatpush.bf16.msra.mxu0 %v810
        %1171 = vmatpush.bf16.msra.mxu0 %v806
        %1172 = vmatmul.bf16.gmra.mxu0 %v407
        %v1173 = vpop.f32.mrf.mxu0
        %v1174 = vadd.f32 %v414, %v1173
        %v1175 = vpop.f32.mrf.mxu0
        %1176 = vdwg.mxu0
        %1177 = vmatpush.bf16.msra.mxu0 %v866
        %1178 = vmatpush.bf16.msra.mxu0 %v862
        %1179 = vmatpush.bf16.msra.mxu0 %v858
        %1180 = vmatpush.bf16.msra.mxu0 %v854
        %1181 = vmatpush.bf16.msra.mxu0 %v850
        %1182 = vmatpush.bf16.msra.mxu0 %v846
        %1183 = vmatpush.bf16.msra.mxu0 %v842
        %1184 = vmatpush.bf16.msra.mxu0 %v838
        %1185 = vmatmul.bf16.gmra.mxu0 %v408
        %v1186 = vpop.f32.mrf.mxu0
        %v1187 = vadd.f32 %v1174, %v1186
        %v1188 = vpop.f32.mrf.mxu0
        %1189 = vdwg.mxu0
        %1190 = vmatpush.bf16.msra.mxu0 %v898
        %1191 = vmatpush.bf16.msra.mxu0 %v894
        %1192 = vmatpush.bf16.msra.mxu0 %v890
        %1193 = vmatpush.bf16.msra.mxu0 %v886
        %1194 = vmatpush.bf16.msra.mxu0 %v882
        %1195 = vmatpush.bf16.msra.mxu0 %v878
        %1196 = vmatpush.bf16.msra.mxu0 %v874
        %1197 = vmatpush.bf16.msra.mxu0 %v870
        %1198 = vmatmul.bf16.gmra.mxu0 %v409
        %v1199 = vpop.f32.mrf.mxu0
        %v1200 = vadd.f32 %v1187, %v1199
        %v1201 = vpop.f32.mrf.mxu0
        %1202 = vdwg.mxu0
        %1203 = vmatpush.bf16.msra.mxu0 %v930
        %1204 = vmatpush.bf16.msra.mxu0 %v926
        %1205 = vmatpush.bf16.msra.mxu0 %v922
        %1206 = vmatpush.bf16.msra.mxu0 %v918
        %1207 = vmatpush.bf16.msra.mxu0 %v914
        %1208 = vmatpush.bf16.msra.mxu0 %v910
        %1209 = vmatpush.bf16.msra.mxu0 %v906
        %1210 = vmatpush.bf16.msra.mxu0 %v902
        %1211 = vmatmul.bf16.gmra.mxu0 %v410
        %v1212 = vpop.f32.mrf.mxu0
        %v1213 = vadd.f32 %v1200, %v1212
        %v1214 = vpop.f32.mrf.mxu0
        %1215 = vdwg.mxu0
        %1216 = vmatpush.bf16.msra.mxu0 %v835
        %1217 = vmatpush.bf16.msra.mxu0 %v831
        %1218 = vmatpush.bf16.msra.mxu0 %v827
        %1219 = vmatpush.bf16.msra.mxu0 %v823
        %1220 = vmatpush.bf16.msra.mxu0 %v819
        %1221 = vmatpush.bf16.msra.mxu0 %v815
        %1222 = vmatpush.bf16.msra.mxu0 %v811
        %1223 = vmatpush.bf16.msra.mxu0 %v807
        %1224 = vmatmul.bf16.gmra.mxu0 %v407
        %v1225 = vpop.f32.mrf.mxu0
        %v1226 = vadd.f32 %v415, %v1225
        %v1227 = vpop.f32.mrf.mxu0
        %1228 = vdwg.mxu0
        %1229 = vmatpush.bf16.msra.mxu0 %v867
        %1230 = vmatpush.bf16.msra.mxu0 %v863
        %1231 = vmatpush.bf16.msra.mxu0 %v859
        %1232 = vmatpush.bf16.msra.mxu0 %v855
        %1233 = vmatpush.bf16.msra.mxu0 %v851
        %1234 = vmatpush.bf16.msra.mxu0 %v847
        %1235 = vmatpush.bf16.msra.mxu0 %v843
        %1236 = vmatpush.bf16.msra.mxu0 %v839
        %1237 = vmatmul.bf16.gmra.mxu0 %v408
        %v1238 = vpop.f32.mrf.mxu0
        %v1239 = vadd.f32 %v1226, %v1238
        %v1240 = vpop.f32.mrf.mxu0
        %1241 = vdwg.mxu0
        %1242 = vmatpush.bf16.msra.mxu0 %v899
        %1243 = vmatpush.bf16.msra.mxu0 %v895
        %1244 = vmatpush.bf16.msra.mxu0 %v891
        %1245 = vmatpush.bf16.msra.mxu0 %v887
        %1246 = vmatpush.bf16.msra.mxu0 %v883
        %1247 = vmatpush.bf16.msra.mxu0 %v879
        %1248 = vmatpush.bf16.msra.mxu0 %v875
        %1249 = vmatpush.bf16.msra.mxu0 %v871
        %1250 = vmatmul.bf16.gmra.mxu0 %v409
        %v1251 = vpop.f32.mrf.mxu0
        %v1252 = vadd.f32 %v1239, %v1251
        %v1253 = vpop.f32.mrf.mxu0
        %1254 = vdwg.mxu0
        %1255 = vmatpush.bf16.msra.mxu0 %v931
        %1256 = vmatpush.bf16.msra.mxu0 %v927
        %1257 = vmatpush.bf16.msra.mxu0 %v923
        %1258 = vmatpush.bf16.msra.mxu0 %v919
        %1259 = vmatpush.bf16.msra.mxu0 %v915
        %1260 = vmatpush.bf16.msra.mxu0 %v911
        %1261 = vmatpush.bf16.msra.mxu0 %v907
        %1262 = vmatpush.bf16.msra.mxu0 %v903
        %1263 = vmatmul.bf16.gmra.mxu0 %v410
        %v1264 = vpop.f32.mrf.mxu0
        %v1265 = vadd.f32 %v1252, %v1264
        %v1266 = vpop.f32.mrf.mxu0
        %1267 = vdwg.mxu0
        %vm1268 = vcmp.ge.f32.partialorder %v1109, 0.0
        %vm1269 = vcmp.ge.f32.partialorder %v1161, 0.0
        %vm1270 = vcmp.ge.f32.partialorder %v1213, 0.0
        %vm1271 = vcmp.ge.f32.partialorder %v1265, 0.0
        %v1272 = vmul.f32 %v1109, 0.2
        %v1273 = vmul.f32 %v1161, 0.2
        %v1274 = vmul.f32 %v1213, 0.2
        %v1275 = vmul.f32 %v1265, 0.2
        %v1276 = vsel %vm1268, %v1109, %v1272
        %v1277 = vsel %vm1269, %v1161, %v1273
        %v1278 = vsel %vm1270, %v1213, %v1274
        %v1279 = vsel %vm1271, %v1265, %v1275
        %v1280 = vmul.f32 %v1276, 1.4142135
        %v1281 = vmul.f32 %v1277, 1.4142135
        %v1282 = vmul.f32 %v1278, 1.4142135
        %v1283 = vmul.f32 %v1279, 1.4142135
        %1284 = vst [vmem:[#allocation2] sm:$0xff] %v1280
        %1285 = vst [vmem:[#allocation2 + $0x8] sm:$0xff] %v1281
        %1286 = vst [vmem:[#allocation2 + $0x10] sm:$0xff] %v1282
        %1287 = vst [vmem:[#allocation2 + $0x18] sm:$0xff] %v1283
        %p1288 = scmp.eq.s32.totalorder %s19, 3
        // Predicated region
        $region49: #{tpu_custom_call.1} parent=31 // pred_check
          %p1289 = pneg %p1288
        $region50: #{tpu_custom_call.1} parent=31 // pred_check_branch
          %1291 = sbr.rel (%p1289) target = $region52
        $region51: #{tpu_custom_call.1} parent=31 // pred_region
          %v1292 = vld [vmem:[#allocation2] sm:$0xff]
          %v1293 = vld [vmem:[#allocation2 + $0x8] sm:$0xff]
          %v1294 = vld [vmem:[#allocation2 + $0x10] sm:$0xff]
          %v1295 = vld [vmem:[#allocation2 + $0x18] sm:$0xff]
          %1296 = vst [vmem:[#allocation9] sm:$0xff] %v1292
          %1297 = vst [vmem:[#allocation9 + $0x8] sm:$0xff] %v1293
          %1298 = vst [vmem:[#allocation9 + $0x10] sm:$0xff] %v1294
          %1299 = vst [vmem:[#allocation9 + $0x18] sm:$0xff] %v1295
        $region52: #{tpu_custom_call.1} parent=31 // pred_fallthru
          _
        // Predicated region
        $region53: #{tpu_custom_call.1} parent=31 // pred_check
          %p1300 = pneg %p105
        $region54: #{tpu_custom_call.1} parent=31 // pred_check_branch
          %1302 = sbr.rel (%p1300) target = $region56
        $region55: #{tpu_custom_call.1} parent=31 // pred_region
          %1304 = vsyncadd [#allocation5], 0
          %s1306 = sshll.u32 [#allocation9], 4
          %s1307 = int_to_ptr.vmem [resolvable:$true] %s1306
          %s1308 = sshll.u32 %s3, 4
          %s1309 = int_to_ptr.hbm [resolvable:$true] %s1308
          %1311 = dma.vmem_to_hbm [thread:$0]  %s1307, 512, %s1309, [#allocation5]
        $region56: #{tpu_custom_call.1} parent=31 // pred_fallthru
          _
        // Predicated region
        $region57: #{tpu_custom_call.1} parent=31 // pred_check
          %p1312 = pneg %p105
        $region58: #{tpu_custom_call.1} parent=31 // pred_check_branch
          %1314 = sbr.rel (%p1312) target = $region60
        $region59: #{tpu_custom_call.1} parent=31 // pred_region
          %1316 = dma.done [#allocation5], 512
        $region60: #{tpu_custom_call.1} parent=31 // pred_fallthru
          _
      $region32: #{tpu_custom_call.1} parent=5 // pred_fallthru
        _
      %p1317 = scmp.le.s32.totalorder 2, %s14
      // Predicated region
      $region61: #{tpu_custom_call.1} parent=5 // pred_check
        %p1318 = pneg %p1317
      $region62: #{tpu_custom_call.1} parent=5 // pred_check_branch
        %1320 = sbr.rel (%p1318) target = $region64
      $region63: #{tpu_custom_call.1} parent=5 // pred_region
        %s1321 = ssub.s32 %s14, 2
      $region64: #{tpu_custom_call.1} parent=5 // pred_fallthru
        _
    $region6: #{tpu_custom_call.1} parent=1 // loop_footer
      %s18 = sadd.s32 1, %s14
    $region7: #{tpu_custom_call.1} parent=1 // loop_footer_branch
      %13 = sbr.rel target = $region3
    $region8: #{tpu_custom_call.1} parent=1 // loop_exit
      _
    %1322 = vsyncpa [#allocation4], 1
    %s1323 = scalar_lea.sflag [#allocation4], 1
    %1324 = vsyncpa %s1323, 1
    %1325 = vsyncpa [#allocation7], 1
    %s1326 = scalar_lea.sflag [#allocation7], 1
    %1327 = vsyncpa %s1326, 1
    %1328 = vsyncpa [#allocation5], 1
    %s1329 = scalar_lea.sflag [#allocation5], 1
    %1330 = vsyncpa %s1329, 1

</llo_original>
